<compile_context>
chip_gen: v5e
topology: v5e:2x2
jax: 0.10.0
libtpu: 0.0.40
codegen_flags: <defaults>
</compile_context>

<pallas_src>
import functools

import jax
import jax.numpy as jnp
from jax import lax
from jax.experimental import pallas as pl
from jax.experimental.pallas import tpu as pltpu

EPS_GINE = 0.0   # GINEConv eps (train_eps=False default)
EPS_BN = 1e-5    # BatchNorm1d default eps
C_PAD = 128      # lane-dense padded feature width


def _round_up(v, m):
    return -(-v // m) * m


def _pad2(a, rows, cols):
    return jnp.pad(a, ((0, rows - a.shape[0]), (0, cols - a.shape[1])))


def _fold_bn(w, b, gamma, beta, mean, var):
    """Fold eval-mode BatchNorm1d into the preceding Linear (exact in f32)."""
    inv = gamma / jnp.sqrt(var + EPS_BN)          # [1, H]
    return w * inv, (b - mean) * inv + beta


def _vmem():
    return pl.BlockSpec(memory_space=pltpu.MemorySpace.VMEM)


def _smem():
    return pl.BlockSpec(memory_space=pltpu.MemorySpace.SMEM)


# ---------------------------------------------------------------------------
# Single fused Pallas kernel: all GINE layers + MLPs + global_add_pool.
# ---------------------------------------------------------------------------
def fused_gine_kernel(src_ref, dst_ref, batch_ref, x_ref, ea_ref, *rest,
                      num_layers, mlp_layers, n_nodes, n_edges, n_graphs,
                      c_pad, compute_dtype):
    # rest = (*param_refs, out_ref, h_buf, agg_buf, eproj_buf, pool_buf)
    param_refs = rest[:-5]          # per layer: edge_w, edge_b, (w, b)*mlp_layers
    out_ref = rest[-5]              # [G, num_layers * c_pad]  (f32, VMEM)
    h_buf, agg_buf, eproj_buf, pool_buf = rest[-4:]

    h_buf[...] = x_ref[...]                              # [N_pad, c_pad], pads zero
    edge_attr = ea_ref[...].astype(compute_dtype)        # [E_pad, F]

    idx = 0
    for l in range(num_layers):
        ew = param_refs[idx][...]        # [F, c_pad]  edge lin weight (padded)
        eb = param_refs[idx + 1][...]    # [1, c_pad]  edge lin bias (f32)
        idx += 2

        # Edge projection: one plain MXU dot (no stacked-RHS / host concat).
        # Stored to VMEM scratch so rows can be indexed dynamically below.
        eproj_buf[...] = jnp.dot(edge_attr, ew,
                                 preferred_element_type=jnp.float32) + eb

        # Index-based gather + scatter-add (replaces the dense one-hot matmuls):
        #   msg_e = relu(h[src_e] + eproj_e);  agg[dst_e] += msg_e
        agg_buf[...] = jnp.zeros_like(agg_buf)

        def edge_body(e, carry):
            s = src_ref[e]
            d = dst_ref[e]
            msg = jnp.maximum(
                h_buf[pl.ds(s, 1), :] + eproj_buf[pl.ds(e, 1), :], 0.0)
            agg_buf[pl.ds(d, 1), :] = agg_buf[pl.ds(d, 1), :] + msg
            return carry

        lax.fori_loop(0, n_edges, edge_body, 0)

        if EPS_GINE != 0.0:
            h = (1.0 + EPS_GINE) * h_buf[...] + agg_buf[...]
        else:
            h = h_buf[...] + agg_buf[...]        # skip pointless multiply

        # MLP: Linear (+ folded BatchNorm) + ReLU; Dropout = identity (eval).
        for _ in range(mlp_layers):
            w = param_refs[idx][...]             # [c_pad, c_pad]
            b = param_refs[idx + 1][...]         # [1, c_pad]  (f32)
            idx += 2
            h = jnp.maximum(
                jnp.dot(h.astype(compute_dtype), w,
                        preferred_element_type=jnp.float32) + b, 0.0)

        h_buf[...] = h

        # Index-based global_add_pool (no [G, N] one-hot matmul).
        pool_buf[...] = jnp.zeros_like(pool_buf)

        def pool_body(i, carry):
            g = batch_ref[i]
            pool_buf[pl.ds(g, 1), :] = (pool_buf[pl.ds(g, 1), :]
                                        + h_buf[pl.ds(i, 1), :])
            return carry

        lax.fori_loop(0, n_nodes, pool_body, 0)

        out_ref[:, l * c_pad:(l + 1) * c_pad] = pool_buf[0:n_graphs, :]


# ---------------------------------------------------------------------------
# Host-side wrapper: fold BN, pad params, build the single pallas_call.
# ---------------------------------------------------------------------------
def build_gine_forward(params, n_nodes, n_edges, num_graphs,
                       num_edge_features, compute_dtype=jnp.float32):
    num_layers = len(params["convs"])
    mlp_layers = len(params["convs"][0]["mlp"])
    hid = params["convs"][0]["mlp"][-1][0].shape[1]

    n_pad = _round_up(max(n_nodes, 8), 8)
    e_pad = _round_up(max(n_edges, 8), 8)
    g_pad = _round_up(max(num_graphs, 8), 8)

    flat_params = []
    for layer in params["convs"]:
        flat_params.append(
            _pad2(layer["edge_w"], num_edge_features, C_PAD).astype(compute_dtype))
        flat_params.append(_pad2(layer["edge_b"], 1, C_PAD))        # bias stays f32
        for (w, b, gamma, beta, mean, var) in layer["mlp"]:
            wf, bf = _fold_bn(w, b, gamma, beta, mean, var)
            flat_params.append(_pad2(wf, C_PAD, C_PAD).astype(compute_dtype))
            flat_params.append(_pad2(bf, 1, C_PAD))                 # bias stays f32

    kernel = functools.partial(
        fused_gine_kernel, num_layers=num_layers, mlp_layers=mlp_layers,
        n_nodes=n_nodes, n_edges=n_edges, n_graphs=num_graphs, c_pad=C_PAD,
        compute_dtype=compute_dtype)

    n_inputs = 5 + len(flat_params)
    call = pl.pallas_call(
        kernel,
        out_shape=jax.ShapeDtypeStruct((num_graphs, num_layers * C_PAD),
                                       jnp.float32),
        in_specs=[_smem(), _smem(), _smem()] + [_vmem()] * (n_inputs - 3),
        out_specs=_vmem(),
        scratch_shapes=[
            pltpu.VMEM((n_pad, C_PAD), jnp.float32),   # h (node embeddings)
            pltpu.VMEM((n_pad, C_PAD), jnp.float32),   # scatter-add accumulator
            pltpu.VMEM((e_pad, C_PAD), jnp.float32),   # edge projections
            pltpu.VMEM((g_pad, C_PAD), jnp.float32),   # per-layer pooled sums
        ],
        compiler_params=pltpu.CompilerParams(vmem_limit_bytes=32 * 1024 * 1024),
    )

    def forward(x, src, dst, batch_id, edge_attr):
        x_pad = _pad2(x, n_pad, C_PAD)
        ea_pad = _pad2(edge_attr, e_pad, edge_attr.shape[1])
        out = call(src.astype(jnp.int32), dst.astype(jnp.int32),
                   batch_id.astype(jnp.int32), x_pad, ea_pad, *flat_params)
        # Strip lane padding and concat per-layer pools -> [G, num_layers*hid].
        return jnp.concatenate(
            [out[:, l * C_PAD: l * C_PAD + hid] for l in range(num_layers)],
            axis=1)

    return forward


# ---------------------------------------------------------------------------
# Parameter construction (deterministic synthetic init)
# ---------------------------------------------------------------------------
def make_params(key, gra_enc_l, gra_enc_h, gra_enc_mlp_l,
                num_node_features, num_edge_features):
    params = {"convs": []}
    for i in range(gra_enc_l):
        c_in = num_node_features if i == 0 else gra_enc_h
        key, k_ew, k_eb = jax.random.split(key, 3)
        edge_w = jax.random.normal(k_ew, (num_edge_features, c_in),
                                   jnp.float32) * 0.2
        edge_b = jax.random.normal(k_eb, (1, c_in), jnp.float32) * 0.05
        mlp = []
        for j in range(gra_enc_mlp_l):
            lin_in = c_in if j == 0 else gra_enc_h
            key, kw, kb, kg, kbe, km, kv = jax.random.split(key, 7)
            w = jax.random.normal(kw, (lin_in, gra_enc_h), jnp.float32) * 0.2
            b = jax.random.normal(kb, (1, gra_enc_h), jnp.float32) * 0.05
            gamma = 1.0 + 0.1 * jax.random.normal(kg, (1, gra_enc_h), jnp.float32)
            beta = 0.05 * jax.random.normal(kbe, (1, gra_enc_h), jnp.float32)
            mean = 0.1 * jax.random.normal(km, (1, gra_enc_h), jnp.float32)
            var = 0.5 + jnp.abs(jax.random.normal(kv, (1, gra_enc_h), jnp.float32))
            mlp.append((w, b, gamma, beta, mean, var))
        params["convs"].append({"edge_w": edge_w, "edge_b": edge_b, "mlp": mlp})
    return params


# ---------------------------------------------------------------------------
# Pure-JAX reference (unfolded BN, index-based gather/scatter)
# ---------------------------------------------------------------------------
def reference_forward(x, edge_index, batch_id, edge_attr, params, num_graphs):
    src, dst = edge_index[0], edge_index[1]
    h = x
    pools = []
    for layer in params["convs"]:
        eproj = edge_attr @ layer["edge_w"] + layer["edge_b"][0]
        msg = jnp.maximum(h[src] + eproj, 0.0)
        agg = jax.ops.segment_sum(msg, dst, num_segments=h.shape[0])
        z = (1.0 + EPS_GINE) * h + agg
        for (w, b, gamma, beta, mean, var) in layer["mlp"]:
            z = z @ w + b[0]
            z = (z - mean[0]) / jnp.sqrt(var[0] + EPS_BN) * gamma[0] + beta[0]
            z = jnp.maximum(z, 0.0)
        h = z
        pools.append(jax.ops.segment_sum(h, batch_id, num_segments=num_graphs))
    return jnp.concatenate(pools, axis=1)


# ---------------------------------------------------------------------------
if __name__ == "__main__":
    # Hyperparameters implied by the module __init__.
    gra_enc_l = 2
    gra_enc_h = 32
    gra_enc_mlp_l = 2
    num_node_features = 8
    num_edge_features = 8

    # Graph sizes.
    N = 16   # nodes
    E = 64   # edges
    G = 2    # graphs in batch

    key = jax.random.PRNGKey(0)
    key, kx, ks, kd, ke = jax.random.split(key, 5)
    x = jax.random.normal(kx, (N, num_node_features), jnp.float32)
    src = jax.random.randint(ks, (E,), 0, N, dtype=jnp.int32)
    dst = jax.random.randint(kd, (E,), 0, N, dtype=jnp.int32)
    edge_index = jnp.stack([src, dst], axis=0)                    # [2, E]
    edge_attr = jax.random.normal(ke, (E, num_edge_features), jnp.float32)
    seq_batch_node_id = jnp.repeat(jnp.arange(G, dtype=jnp.int32), N // G)

    params = make_params(key, gra_enc_l, gra_enc_h, gra_enc_mlp_l,
                         num_node_features, num_edge_features)

    expected = reference_forward(x, edge_index, seq_batch_node_id, edge_attr,
                                 params, G)

    # f32 path: exact (index gather/scatter and BN folding are exact in f32).
    fwd = jax.jit(build_gine_forward(params, N, E, G, num_edge_features,
                                     compute_dtype=jnp.float32))
    out_f32 = jax.block_until_ready(fwd(x, src, dst, seq_batch_node_id, edge_attr))
    assert out_f32.shape == (G, gra_enc_l * gra_enc_h), out_f32.shape
    assert jnp.allclose(out_f32, expected, rtol=1e-3, atol=1e-3), (
        float(jnp.max(jnp.abs(out_f32 - expected))))

    # bf16 MXU path (v6e/v7x recommendation): weights + matmul operands in bf16,
    # f32 accumulation; tolerance loosened per review (~1% after two layers).
    fwd_bf16 = jax.jit(build_gine_forward(params, N, E, G, num_edge_features,
                                          compute_dtype=jnp.bfloat16))
    out_bf16 = jax.block_until_ready(
        fwd_bf16(x, src, dst, seq_batch_node_id, edge_attr))
    assert out_bf16.shape == (G, gra_enc_l * gra_enc_h), out_bf16.shape
    assert jnp.allclose(out_bf16, expected, rtol=5e-2, atol=0.5), (
        float(jnp.max(jnp.abs(out_bf16 - expected))))

    print("KERNEL_OK")
</pallas_src>

<mosaic_0001>
module attributes {stable_mosaic.version = 11 : i64} {
  func.func @fused_gine_kernel(%arg0: memref<64xi32, #tpu.memory_space<smem>>, %arg1: memref<64xi32, #tpu.memory_space<smem>>, %arg2: memref<16xi32, #tpu.memory_space<smem>>, %arg3: memref<16x128xf32, #tpu.memory_space<vmem>>, %arg4: memref<64x8xf32, #tpu.memory_space<vmem>>, %arg5: memref<8x128xf32, #tpu.memory_space<vmem>>, %arg6: memref<1x128xf32, #tpu.memory_space<vmem>>, %arg7: memref<128x128xf32, #tpu.memory_space<vmem>>, %arg8: memref<1x128xf32, #tpu.memory_space<vmem>>, %arg9: memref<128x128xf32, #tpu.memory_space<vmem>>, %arg10: memref<1x128xf32, #tpu.memory_space<vmem>>, %arg11: memref<8x128xf32, #tpu.memory_space<vmem>>, %arg12: memref<1x128xf32, #tpu.memory_space<vmem>>, %arg13: memref<128x128xf32, #tpu.memory_space<vmem>>, %arg14: memref<1x128xf32, #tpu.memory_space<vmem>>, %arg15: memref<128x128xf32, #tpu.memory_space<vmem>>, %arg16: memref<1x128xf32, #tpu.memory_space<vmem>>, %arg17: memref<2x256xf32, #tpu.memory_space<vmem>>, %arg18: memref<16x128xf32, #tpu.memory_space<vmem>>, %arg19: memref<16x128xf32, #tpu.memory_space<vmem>>, %arg20: memref<64x128xf32, #tpu.memory_space<vmem>>, %arg21: memref<8x128xf32, #tpu.memory_space<vmem>>) attributes {dimension_semantics = [], scalar_prefetch = 0 : i64, scratch_operands = 4 : i64, tpu.core_type = #tpu.core_type<tc>} {
    %c0 = arith.constant 0 : index
    %c0_0 = arith.constant 0 : index
    %0 = vector.load %arg3[%c0, %c0_0] : memref<16x128xf32, #tpu.memory_space<vmem>>, vector<16x128xf32>
    %c0_1 = arith.constant 0 : index
    %c0_2 = arith.constant 0 : index
    %1 = vector.load %arg18[%c0_1, %c0_2] : memref<16x128xf32, #tpu.memory_space<vmem>>, vector<16x128xf32>
    tpu.vector_store %arg18[%c0_1, %c0_2], %0 {strides = array<i32>} : memref<16x128xf32, #tpu.memory_space<vmem>>, vector<16x128xf32>,
    %c0_3 = arith.constant 0 : index
    %c0_4 = arith.constant 0 : index
    %2 = vector.load %arg4[%c0_3, %c0_4] : memref<64x8xf32, #tpu.memory_space<vmem>>, vector<64x8xf32>
    %c0_5 = arith.constant 0 : index
    %c0_6 = arith.constant 0 : index
    %3 = vector.load %arg5[%c0_5, %c0_6] : memref<8x128xf32, #tpu.memory_space<vmem>>, vector<8x128xf32>
    %c0_7 = arith.constant 0 : index
    %c0_8 = arith.constant 0 : index
    %4 = vector.load %arg6[%c0_7, %c0_8] : memref<1x128xf32, #tpu.memory_space<vmem>>, vector<1x128xf32>
    %cst = arith.constant dense<0.000000e+00> : vector<64x128xf32>
    %5 = tpu.matmul %2, %3, %cst {dimension_numbers = #tpu.dot_dimension_numbers<[1], [0], [0], [1], [0, 0, 1, 1], [], []>} : vector<64x8xf32>, vector<8x128xf32>, vector<64x128xf32> -> vector<64x128xf32>
    %6 = vector.broadcast %4 : vector<1x128xf32> to vector<64x128xf32>
    %7 = arith.addf %5, %6 : vector<64x128xf32>
    %c0_9 = arith.constant 0 : index
    %c0_10 = arith.constant 0 : index
    %8 = vector.load %arg20[%c0_9, %c0_10] : memref<64x128xf32, #tpu.memory_space<vmem>>, vector<64x128xf32>
    tpu.vector_store %arg20[%c0_9, %c0_10], %7 {strides = array<i32>} : memref<64x128xf32, #tpu.memory_space<vmem>>, vector<64x128xf32>,
    %cst_11 = arith.constant 0.000000e+00 : f32
    %9 = vector.broadcast %cst_11 : f32 to vector<16x128xf32>
    %c0_12 = arith.constant 0 : index
    %c0_13 = arith.constant 0 : index
    %10 = vector.load %arg19[%c0_12, %c0_13] : memref<16x128xf32, #tpu.memory_space<vmem>>, vector<16x128xf32>
    tpu.vector_store %arg19[%c0_12, %c0_13], %9 {strides = array<i32>} : memref<16x128xf32, #tpu.memory_space<vmem>>, vector<16x128xf32>,
    %c0_i32 = arith.constant 0 : i32
    %c64_i32 = arith.constant 64 : i32
    %11 = arith.addi %c0_i32, %c64_i32 : i32
    %c1_i32 = arith.constant 1 : i32
    scf.for %arg22 = %c0_i32 to %11 step %c1_i32  : i32 {
      %67 = arith.index_cast %arg22 : i32 to index
      %68 = memref.load %arg0[%67] : memref<64xi32, #tpu.memory_space<smem>>
      %69 = arith.index_cast %arg22 : i32 to index
      %70 = memref.load %arg1[%69] : memref<64xi32, #tpu.memory_space<smem>>
      %71 = arith.index_cast %68 : i32 to index
      %c0_85 = arith.constant 0 : index
      %72 = vector.load %arg18[%71, %c0_85] : memref<16x128xf32, #tpu.memory_space<vmem>>, vector<1x128xf32>
      %73 = arith.index_cast %arg22 : i32 to index
      %c0_86 = arith.constant 0 : index
      %74 = vector.load %arg20[%73, %c0_86] : memref<64x128xf32, #tpu.memory_space<vmem>>, vector<1x128xf32>
      %75 = arith.addf %72, %74 : vector<1x128xf32>
      %cst_87 = arith.constant 0.000000e+00 : f32
      %76 = vector.broadcast %cst_87 : f32 to vector<1x128xf32>
      %77 = arith.maximumf %75, %76 : vector<1x128xf32>
      %78 = arith.index_cast %70 : i32 to index
      %c0_88 = arith.constant 0 : index
      %79 = vector.load %arg19[%78, %c0_88] : memref<16x128xf32, #tpu.memory_space<vmem>>, vector<1x128xf32>
      %80 = arith.addf %79, %77 : vector<1x128xf32>
      %81 = arith.index_cast %70 : i32 to index
      %c0_89 = arith.constant 0 : index
      %82 = vector.load %arg19[%81, %c0_89] : memref<16x128xf32, #tpu.memory_space<vmem>>, vector<1x128xf32>
      tpu.vector_store %arg19[%81, %c0_89], %80 {strides = array<i32>} : memref<16x128xf32, #tpu.memory_space<vmem>>, vector<1x128xf32>,
    }
    %c64_i32_14 = arith.constant 64 : i32
    %c0_15 = arith.constant 0 : index
    %c0_16 = arith.constant 0 : index
    %12 = vector.load %arg18[%c0_15, %c0_16] : memref<16x128xf32, #tpu.memory_space<vmem>>, vector<16x128xf32>
    %c0_17 = arith.constant 0 : index
    %c0_18 = arith.constant 0 : index
    %13 = vector.load %arg19[%c0_17, %c0_18] : memref<16x128xf32, #tpu.memory_space<vmem>>, vector<16x128xf32>
    %14 = arith.addf %12, %13 : vector<16x128xf32>
    %c0_19 = arith.constant 0 : index
    %c0_20 = arith.constant 0 : index
    %15 = vector.load %arg7[%c0_19, %c0_20] : memref<128x128xf32, #tpu.memory_space<vmem>>, vector<128x128xf32>
    %c0_21 = arith.constant 0 : index
    %c0_22 = arith.constant 0 : index
    %16 = vector.load %arg8[%c0_21, %c0_22] : memref<1x128xf32, #tpu.memory_space<vmem>>, vector<1x128xf32>
    %cst_23 = arith.constant dense<0.000000e+00> : vector<16x128xf32>
    %17 = tpu.matmul %14, %15, %cst_23 {dimension_numbers = #tpu.dot_dimension_numbers<[1], [0], [0], [1], [0, 0, 1, 1], [], []>} : vector<16x128xf32>, vector<128x128xf32>, vector<16x128xf32> -> vector<16x128xf32>
    %18 = vector.broadcast %16 : vector<1x128xf32> to vector<16x128xf32>
    %19 = arith.addf %17, %18 : vector<16x128xf32>
    %cst_24 = arith.constant 0.000000e+00 : f32
    %20 = vector.broadcast %cst_24 : f32 to vector<16x128xf32>
    %21 = arith.maximumf %19, %20 : vector<16x128xf32>
    %c0_25 = arith.constant 0 : index
    %c0_26 = arith.constant 0 : index
    %22 = vector.load %arg9[%c0_25, %c0_26] : memref<128x128xf32, #tpu.memory_space<vmem>>, vector<128x128xf32>
    %c0_27 = arith.constant 0 : index
    %c0_28 = arith.constant 0 : index
    %23 = vector.load %arg10[%c0_27, %c0_28] : memref<1x128xf32, #tpu.memory_space<vmem>>, vector<1x128xf32>
    %cst_29 = arith.constant dense<0.000000e+00> : vector<16x128xf32>
    %24 = tpu.matmul %21, %22, %cst_29 {dimension_numbers = #tpu.dot_dimension_numbers<[1], [0], [0], [1], [0, 0, 1, 1], [], []>} : vector<16x128xf32>, vector<128x128xf32>, vector<16x128xf32> -> vector<16x128xf32>
    %25 = vector.broadcast %23 : vector<1x128xf32> to vector<16x128xf32>
    %26 = arith.addf %24, %25 : vector<16x128xf32>
    %cst_30 = arith.constant 0.000000e+00 : f32
    %27 = vector.broadcast %cst_30 : f32 to vector<16x128xf32>
    %28 = arith.maximumf %26, %27 : vector<16x128xf32>
    %c0_31 = arith.constant 0 : index
    %c0_32 = arith.constant 0 : index
    %29 = vector.load %arg18[%c0_31, %c0_32] : memref<16x128xf32, #tpu.memory_space<vmem>>, vector<16x128xf32>
    tpu.vector_store %arg18[%c0_31, %c0_32], %28 {strides = array<i32>} : memref<16x128xf32, #tpu.memory_space<vmem>>, vector<16x128xf32>,
    %cst_33 = arith.constant 0.000000e+00 : f32
    %30 = vector.broadcast %cst_33 : f32 to vector<8x128xf32>
    %c0_34 = arith.constant 0 : index
    %c0_35 = arith.constant 0 : index
    %31 = vector.load %arg21[%c0_34, %c0_35] : memref<8x128xf32, #tpu.memory_space<vmem>>, vector<8x128xf32>
    tpu.vector_store %arg21[%c0_34, %c0_35], %30 {strides = array<i32>} : memref<8x128xf32, #tpu.memory_space<vmem>>, vector<8x128xf32>,
    %c0_i32_36 = arith.constant 0 : i32
    %c16_i32 = arith.constant 16 : i32
    %32 = arith.addi %c0_i32_36, %c16_i32 : i32
    %c1_i32_37 = arith.constant 1 : i32
    scf.for %arg22 = %c0_i32_36 to %32 step %c1_i32_37  : i32 {
      %67 = arith.index_cast %arg22 : i32 to index
      %68 = memref.load %arg2[%67] : memref<16xi32, #tpu.memory_space<smem>>
      %69 = arith.index_cast %68 : i32 to index
      %c0_85 = arith.constant 0 : index
      %70 = vector.load %arg21[%69, %c0_85] : memref<8x128xf32, #tpu.memory_space<vmem>>, vector<1x128xf32>
      %71 = arith.index_cast %arg22 : i32 to index
      %c0_86 = arith.constant 0 : index
      %72 = vector.load %arg18[%71, %c0_86] : memref<16x128xf32, #tpu.memory_space<vmem>>, vector<1x128xf32>
      %73 = arith.addf %70, %72 : vector<1x128xf32>
      %74 = arith.index_cast %68 : i32 to index
      %c0_87 = arith.constant 0 : index
      %75 = vector.load %arg21[%74, %c0_87] : memref<8x128xf32, #tpu.memory_space<vmem>>, vector<1x128xf32>
      tpu.vector_store %arg21[%74, %c0_87], %73 {strides = array<i32>} : memref<8x128xf32, #tpu.memory_space<vmem>>, vector<1x128xf32>,
    }
    %c16_i32_38 = arith.constant 16 : i32
    %c0_39 = arith.constant 0 : index
    %c0_40 = arith.constant 0 : index
    %33 = vector.load %arg21[%c0_39, %c0_40] : memref<8x128xf32, #tpu.memory_space<vmem>>, vector<2x128xf32>
    %c0_41 = arith.constant 0 : index
    %c0_42 = arith.constant 0 : index
    %34 = vector.load %arg17[%c0_41, %c0_42] : memref<2x256xf32, #tpu.memory_space<vmem>>, vector<2x128xf32>
    tpu.vector_store %arg17[%c0_41, %c0_42], %33 {strides = array<i32>} : memref<2x256xf32, #tpu.memory_space<vmem>>, vector<2x128xf32>,
    %c0_43 = arith.constant 0 : index
    %c0_44 = arith.constant 0 : index
    %35 = vector.load %arg11[%c0_43, %c0_44] : memref<8x128xf32, #tpu.memory_space<vmem>>, vector<8x128xf32>
    %c0_45 = arith.constant 0 : index
    %c0_46 = arith.constant 0 : index
    %36 = vector.load %arg12[%c0_45, %c0_46] : memref<1x128xf32, #tpu.memory_space<vmem>>, vector<1x128xf32>
    %cst_47 = arith.constant dense<0.000000e+00> : vector<64x128xf32>
    %37 = tpu.matmul %2, %35, %cst_47 {dimension_numbers = #tpu.dot_dimension_numbers<[1], [0], [0], [1], [0, 0, 1, 1], [], []>} : vector<64x8xf32>, vector<8x128xf32>, vector<64x128xf32> -> vector<64x128xf32>
    %38 = vector.broadcast %36 : vector<1x128xf32> to vector<64x128xf32>
    %39 = arith.addf %37, %38 : vector<64x128xf32>
    %c0_48 = arith.constant 0 : index
    %c0_49 = arith.constant 0 : index
    %40 = vector.load %arg20[%c0_48, %c0_49] : memref<64x128xf32, #tpu.memory_space<vmem>>, vector<64x128xf32>
    tpu.vector_store %arg20[%c0_48, %c0_49], %39 {strides = array<i32>} : memref<64x128xf32, #tpu.memory_space<vmem>>, vector<64x128xf32>,
    %cst_50 = arith.constant 0.000000e+00 : f32
    %41 = vector.broadcast %cst_50 : f32 to vector<16x128xf32>
    %c0_51 = arith.constant 0 : index
    %c0_52 = arith.constant 0 : index
    %42 = vector.load %arg19[%c0_51, %c0_52] : memref<16x128xf32, #tpu.memory_space<vmem>>, vector<16x128xf32>
    tpu.vector_store %arg19[%c0_51, %c0_52], %41 {strides = array<i32>} : memref<16x128xf32, #tpu.memory_space<vmem>>, vector<16x128xf32>,
    %c0_i32_53 = arith.constant 0 : i32
    %c64_i32_54 = arith.constant 64 : i32
    %43 = arith.addi %c0_i32_53, %c64_i32_54 : i32
    %c1_i32_55 = arith.constant 1 : i32
    scf.for %arg22 = %c0_i32_53 to %43 step %c1_i32_55  : i32 {
      %67 = arith.index_cast %arg22 : i32 to index
      %68 = memref.load %arg0[%67] : memref<64xi32, #tpu.memory_space<smem>>
      %69 = arith.index_cast %arg22 : i32 to index
      %70 = memref.load %arg1[%69] : memref<64xi32, #tpu.memory_space<smem>>
      %71 = arith.index_cast %68 : i32 to index
      %c0_85 = arith.constant 0 : index
      %72 = vector.load %arg18[%71, %c0_85] : memref<16x128xf32, #tpu.memory_space<vmem>>, vector<1x128xf32>
      %73 = arith.index_cast %arg22 : i32 to index
      %c0_86 = arith.constant 0 : index
      %74 = vector.load %arg20[%73, %c0_86] : memref<64x128xf32, #tpu.memory_space<vmem>>, vector<1x128xf32>
      %75 = arith.addf %72, %74 : vector<1x128xf32>
      %cst_87 = arith.constant 0.000000e+00 : f32
      %76 = vector.broadcast %cst_87 : f32 to vector<1x128xf32>
      %77 = arith.maximumf %75, %76 : vector<1x128xf32>
      %78 = arith.index_cast %70 : i32 to index
      %c0_88 = arith.constant 0 : index
      %79 = vector.load %arg19[%78, %c0_88] : memref<16x128xf32, #tpu.memory_space<vmem>>, vector<1x128xf32>
      %80 = arith.addf %79, %77 : vector<1x128xf32>
      %81 = arith.index_cast %70 : i32 to index
      %c0_89 = arith.constant 0 : index
      %82 = vector.load %arg19[%81, %c0_89] : memref<16x128xf32, #tpu.memory_space<vmem>>, vector<1x128xf32>
      tpu.vector_store %arg19[%81, %c0_89], %80 {strides = array<i32>} : memref<16x128xf32, #tpu.memory_space<vmem>>, vector<1x128xf32>,
    }
    %c64_i32_56 = arith.constant 64 : i32
    %c0_57 = arith.constant 0 : index
    %c0_58 = arith.constant 0 : index
    %44 = vector.load %arg18[%c0_57, %c0_58] : memref<16x128xf32, #tpu.memory_space<vmem>>, vector<16x128xf32>
    %c0_59 = arith.constant 0 : index
    %c0_60 = arith.constant 0 : index
    %45 = vector.load %arg19[%c0_59, %c0_60] : memref<16x128xf32, #tpu.memory_space<vmem>>, vector<16x128xf32>
    %46 = arith.addf %44, %45 : vector<16x128xf32>
    %c0_61 = arith.constant 0 : index
    %c0_62 = arith.constant 0 : index
    %47 = vector.load %arg13[%c0_61, %c0_62] : memref<128x128xf32, #tpu.memory_space<vmem>>, vector<128x128xf32>
    %c0_63 = arith.constant 0 : index
    %c0_64 = arith.constant 0 : index
    %48 = vector.load %arg14[%c0_63, %c0_64] : memref<1x128xf32, #tpu.memory_space<vmem>>, vector<1x128xf32>
    %cst_65 = arith.constant dense<0.000000e+00> : vector<16x128xf32>
    %49 = tpu.matmul %46, %47, %cst_65 {dimension_numbers = #tpu.dot_dimension_numbers<[1], [0], [0], [1], [0, 0, 1, 1], [], []>} : vector<16x128xf32>, vector<128x128xf32>, vector<16x128xf32> -> vector<16x128xf32>
    %50 = vector.broadcast %48 : vector<1x128xf32> to vector<16x128xf32>
    %51 = arith.addf %49, %50 : vector<16x128xf32>
    %cst_66 = arith.constant 0.000000e+00 : f32
    %52 = vector.broadcast %cst_66 : f32 to vector<16x128xf32>
    %53 = arith.maximumf %51, %52 : vector<16x128xf32>
    %c0_67 = arith.constant 0 : index
    %c0_68 = arith.constant 0 : index
    %54 = vector.load %arg15[%c0_67, %c0_68] : memref<128x128xf32, #tpu.memory_space<vmem>>, vector<128x128xf32>
    %c0_69 = arith.constant 0 : index
    %c0_70 = arith.constant 0 : index
    %55 = vector.load %arg16[%c0_69, %c0_70] : memref<1x128xf32, #tpu.memory_space<vmem>>, vector<1x128xf32>
    %cst_71 = arith.constant dense<0.000000e+00> : vector<16x128xf32>
    %56 = tpu.matmul %53, %54, %cst_71 {dimension_numbers = #tpu.dot_dimension_numbers<[1], [0], [0], [1], [0, 0, 1, 1], [], []>} : vector<16x128xf32>, vector<128x128xf32>, vector<16x128xf32> -> vector<16x128xf32>
    %57 = vector.broadcast %55 : vector<1x128xf32> to vector<16x128xf32>
    %58 = arith.addf %56, %57 : vector<16x128xf32>
    %cst_72 = arith.constant 0.000000e+00 : f32
    %59 = vector.broadcast %cst_72 : f32 to vector<16x128xf32>
    %60 = arith.maximumf %58, %59 : vector<16x128xf32>
    %c0_73 = arith.constant 0 : index
    %c0_74 = arith.constant 0 : index
    %61 = vector.load %arg18[%c0_73, %c0_74] : memref<16x128xf32, #tpu.memory_space<vmem>>, vector<16x128xf32>
    tpu.vector_store %arg18[%c0_73, %c0_74], %60 {strides = array<i32>} : memref<16x128xf32, #tpu.memory_space<vmem>>, vector<16x128xf32>,
    %cst_75 = arith.constant 0.000000e+00 : f32
    %62 = vector.broadcast %cst_75 : f32 to vector<8x128xf32>
    %c0_76 = arith.constant 0 : index
    %c0_77 = arith.constant 0 : index
    %63 = vector.load %arg21[%c0_76, %c0_77] : memref<8x128xf32, #tpu.memory_space<vmem>>, vector<8x128xf32>
    tpu.vector_store %arg21[%c0_76, %c0_77], %62 {strides = array<i32>} : memref<8x128xf32, #tpu.memory_space<vmem>>, vector<8x128xf32>,
    %c0_i32_78 = arith.constant 0 : i32
    %c16_i32_79 = arith.constant 16 : i32
    %64 = arith.addi %c0_i32_78, %c16_i32_79 : i32
    %c1_i32_80 = arith.constant 1 : i32
    scf.for %arg22 = %c0_i32_78 to %64 step %c1_i32_80  : i32 {
      %67 = arith.index_cast %arg22 : i32 to index
      %68 = memref.load %arg2[%67] : memref<16xi32, #tpu.memory_space<smem>>
      %69 = arith.index_cast %68 : i32 to index
      %c0_85 = arith.constant 0 : index
      %70 = vector.load %arg21[%69, %c0_85] : memref<8x128xf32, #tpu.memory_space<vmem>>, vector<1x128xf32>
      %71 = arith.index_cast %arg22 : i32 to index
      %c0_86 = arith.constant 0 : index
      %72 = vector.load %arg18[%71, %c0_86] : memref<16x128xf32, #tpu.memory_space<vmem>>, vector<1x128xf32>
      %73 = arith.addf %70, %72 : vector<1x128xf32>
      %74 = arith.index_cast %68 : i32 to index
      %c0_87 = arith.constant 0 : index
      %75 = vector.load %arg21[%74, %c0_87] : memref<8x128xf32, #tpu.memory_space<vmem>>, vector<1x128xf32>
      tpu.vector_store %arg21[%74, %c0_87], %73 {strides = array<i32>} : memref<8x128xf32, #tpu.memory_space<vmem>>, vector<1x128xf32>,
    }
    %c16_i32_81 = arith.constant 16 : i32
    %c0_82 = arith.constant 0 : index
    %c0_83 = arith.constant 0 : index
    %65 = vector.load %arg21[%c0_82, %c0_83] : memref<8x128xf32, #tpu.memory_space<vmem>>, vector<2x128xf32>
    %c0_84 = arith.constant 0 : index
    %c128 = arith.constant 128 : index
    %66 = vector.load %arg17[%c0_84, %c128] : memref<2x256xf32, #tpu.memory_space<vmem>>, vector<2x128xf32>
    tpu.vector_store %arg17[%c0_84, %c128], %65 {strides = array<i32>} : memref<2x256xf32, #tpu.memory_space<vmem>>, vector<2x128xf32>,
    return
  }
}

</mosaic_0001>

<llo_original>
// kernel: forward.1
$region0: #{forward.1}
  #allocation0 [shape = 'u32[]', space=smem, size = 0x4, offset = 0x4, fixed_abs, tag = 'smem constant byte address 0x4 - core index']
  #allocation1 [shape = 'u32[72,128]{1,0:T(1,128)}', space=vmem, size = 0x9000, scoped, tag = 'internal scratch']
  #allocation2 [shape = 'f32[16,128]{1,0:T(8,128)}', space=vmem, size = 0x2000, scoped, tag = 'scratch operand']
  #allocation3 [shape = 'f32[16,128]{1,0:T(8,128)}', space=vmem, size = 0x2000, scoped, tag = 'scratch operand']
  #allocation4 [shape = 'f32[64,128]{1,0:T(8,128)}', space=vmem, size = 0x8000, scoped, tag = 'scratch operand']
  #allocation5 [shape = 'f32[8,128]{1,0:T(8,128)}', space=vmem, size = 0x1000, scoped, tag = 'scratch operand']
  %s0 = inlined_call_operand.vmem [shape: s32[64], index: 0, kind: input, shape index: {}]
  %s1 = inlined_call_operand.vmem [shape: s32[64], index: 1, kind: input, shape index: {}]
  %s2 = inlined_call_operand.vmem [shape: s32[16], index: 2, kind: input, shape index: {}]
  %s3 = inlined_call_operand.vmem [shape: f32[16,128], index: 3, kind: input, shape index: {}]
  %s4 = inlined_call_operand.vmem [shape: f32[64,8], index: 4, kind: input, shape index: {}]
  %s5 = inlined_call_operand.vmem [shape: f32[8,128], index: 5, kind: input, shape index: {}]
  %s6 = inlined_call_operand.vmem [shape: f32[1,128], index: 6, kind: input, shape index: {}]
  %s7 = inlined_call_operand.hbm [shape: f32[128,128], index: 7, kind: input, shape index: {}]
  %s8 = inlined_call_operand.vmem [shape: f32[1,128], index: 8, kind: input, shape index: {}]
  %s9 = inlined_call_operand.hbm [shape: f32[128,128], index: 9, kind: input, shape index: {}]
  %s10 = inlined_call_operand.vmem [shape: f32[1,128], index: 10, kind: input, shape index: {}]
  %s11 = inlined_call_operand.vmem [shape: f32[8,128], index: 11, kind: input, shape index: {}]
  %s12 = inlined_call_operand.vmem [shape: f32[1,128], index: 12, kind: input, shape index: {}]
  %s13 = inlined_call_operand.hbm [shape: f32[128,128], index: 13, kind: input, shape index: {}]
  %s14 = inlined_call_operand.vmem [shape: f32[1,128], index: 14, kind: input, shape index: {}]
  %s15 = inlined_call_operand.hbm [shape: f32[128,128], index: 15, kind: input, shape index: {}]
  %s16 = inlined_call_operand.vmem [shape: f32[1,128], index: 16, kind: input, shape index: {}]
  %s17 = inlined_call_operand.vmem [shape: f32[2,256], index: 17, kind: output, shape index: {}]
  %s18 = sld [smem:[#allocation0]]
  $region134: #{forward.1} parent=0
    _
  %s20 = ssub.s32 1, %s18
  %s21 = scalar_select 0, %s20, %s18
  $region1: #{forward.1} parent=0
    #allocation6 [shape = 'u8[512]{0}', space=smem, size = 0x200, scoped, tag = 'input window, operand 0, single buffered']
    #allocation7 [shape = 's32[1]{0}', space=sflag, size = 0x4, scoped, tag = 'scoped memory for forward.1']
    #allocation8 [shape = 's32[1]{0}', space=sflag, size = 0x4, scoped, tag = 'scoped memory for forward.1']
    #allocation9 [shape = 'u8[512]{0}', space=smem, size = 0x200, scoped, tag = 'input window, operand 1, single buffered']
    #allocation10 [shape = 's32[1]{0}', space=sflag, size = 0x4, scoped, tag = 'scoped memory for forward.1']
    #allocation11 [shape = 'u8[512]{0}', space=smem, size = 0x200, scoped, tag = 'input window, operand 2, single buffered']
    #allocation12 [shape = 'u8[65536]{0}', space=vmem, size = 0x10000, scoped, tag = 'input window, operand 7, single buffered']
    #allocation13 [shape = 'u8[65536]{0}', space=vmem, size = 0x10000, scoped, tag = 'input window, operand 9, single buffered']
    #allocation14 [shape = 's32[1]{0}', space=sflag, size = 0x4, scoped, tag = 'scoped memory for forward.1']
    #allocation15 [shape = 'u8[65536]{0}', space=vmem, size = 0x10000, scoped, tag = 'input window, operand 13, single buffered']
    #allocation16 [shape = 'u8[65536]{0}', space=vmem, size = 0x10000, scoped, tag = 'input window, operand 15, single buffered']
    #allocation17 [shape = 's32[1]{0}', space=sflag, size = 0x4, scoped, tag = 'scoped memory for forward.1']
    %22 = vsyncpa [#allocation8], 0
    %23 = vsyncpa [#allocation10], 0
    %24 = vsyncpa [#allocation7], 0
    %25 = vsyncpa [#allocation14], 0
    %26 = vsyncpa [#allocation17], 0
    // Predicated region
    $region2: #{forward.1} parent=1 // pred_check
      _
    $region3: #{forward.1} parent=1 // pred_check_branch
      %28 = sbr.rel (0) target = $region5
    $region4: #{forward.1} parent=1 // pred_region
      %30 = vsyncadd [#allocation8], 0
      %s32 = sshll.u32 %s0, 4
      %s33 = int_to_ptr.vmem [resolvable:$true] %s32
      %35 = dma.vmem_to_smem %s33, 16, [#allocation6], [#allocation8]
    $region5: #{forward.1} parent=1 // pred_fallthru
      _
    // Predicated region
    $region6: #{forward.1} parent=1 // pred_check
      _
    $region7: #{forward.1} parent=1 // pred_check_branch
      %37 = sbr.rel (0) target = $region9
    $region8: #{forward.1} parent=1 // pred_region
      %39 = vsyncadd [#allocation10], 0
      %s41 = sshll.u32 %s1, 4
      %s42 = int_to_ptr.vmem [resolvable:$true] %s41
      %44 = dma.vmem_to_smem %s42, 16, [#allocation9], [#allocation10]
    $region9: #{forward.1} parent=1 // pred_fallthru
      _
    // Predicated region
    $region10: #{forward.1} parent=1 // pred_check
      _
    $region11: #{forward.1} parent=1 // pred_check_branch
      %46 = sbr.rel (0) target = $region13
    $region12: #{forward.1} parent=1 // pred_region
      %48 = vsyncadd [#allocation10], 0
      %s50 = sshll.u32 %s2, 4
      %s51 = int_to_ptr.vmem [resolvable:$true] %s50
      %53 = dma.vmem_to_smem %s51, 16, [#allocation11], [#allocation10]
    $region13: #{forward.1} parent=1 // pred_fallthru
      _
    // Predicated region
    $region14: #{forward.1} parent=1 // pred_check
      _
    $region15: #{forward.1} parent=1 // pred_check_branch
      %55 = sbr.rel (0) target = $region17
    $region16: #{forward.1} parent=1 // pred_region
      _
    $region17: #{forward.1} parent=1 // pred_fallthru
      _
    // Predicated region
    $region18: #{forward.1} parent=1 // pred_check
      _
    $region19: #{forward.1} parent=1 // pred_check_branch
      %57 = sbr.rel (0) target = $region21
    $region20: #{forward.1} parent=1 // pred_region
      _
    $region21: #{forward.1} parent=1 // pred_fallthru
      _
    // Predicated region
    $region22: #{forward.1} parent=1 // pred_check
      _
    $region23: #{forward.1} parent=1 // pred_check_branch
      %59 = sbr.rel (0) target = $region25
    $region24: #{forward.1} parent=1 // pred_region
      _
    $region25: #{forward.1} parent=1 // pred_fallthru
      _
    // Predicated region
    $region26: #{forward.1} parent=1 // pred_check
      _
    $region27: #{forward.1} parent=1 // pred_check_branch
      %61 = sbr.rel (0) target = $region29
    $region28: #{forward.1} parent=1 // pred_region
      _
    $region29: #{forward.1} parent=1 // pred_fallthru
      _
    // Predicated region
    $region30: #{forward.1} parent=1 // pred_check
      _
    $region31: #{forward.1} parent=1 // pred_check_branch
      %63 = sbr.rel (0) target = $region33
    $region32: #{forward.1} parent=1 // pred_region
      %65 = vsyncadd [#allocation7], 0
      %s66 = sshll.u32 %s7, 4
      %s67 = int_to_ptr.hbm [resolvable:$true] %s66
      %s68 = sshll.u32 [#allocation12], 4
      %s69 = int_to_ptr.vmem [resolvable:$true] %s68
      %74 = dma.hbm_to_vmem [thread:$0]  %s67, 2048, %s69, [#allocation7], 128, 128, 8
    $region33: #{forward.1} parent=1 // pred_fallthru
      _
    // Predicated region
    $region34: #{forward.1} parent=1 // pred_check
      _
    $region35: #{forward.1} parent=1 // pred_check_branch
      %76 = sbr.rel (0) target = $region37
    $region36: #{forward.1} parent=1 // pred_region
      _
    $region37: #{forward.1} parent=1 // pred_fallthru
      _
    // Predicated region
    $region38: #{forward.1} parent=1 // pred_check
      _
    $region39: #{forward.1} parent=1 // pred_check_branch
      %78 = sbr.rel (0) target = $region41
    $region40: #{forward.1} parent=1 // pred_region
      %80 = vsyncadd [#allocation14], 0
      %s81 = sshll.u32 %s9, 4
      %s82 = int_to_ptr.hbm [resolvable:$true] %s81
      %s83 = sshll.u32 [#allocation13], 4
      %s84 = int_to_ptr.vmem [resolvable:$true] %s83
      %89 = dma.hbm_to_vmem [thread:$0]  %s82, 2048, %s84, [#allocation14], 128, 128, 8
    $region41: #{forward.1} parent=1 // pred_fallthru
      _
    // Predicated region
    $region42: #{forward.1} parent=1 // pred_check
      _
    $region43: #{forward.1} parent=1 // pred_check_branch
      %91 = sbr.rel (0) target = $region45
    $region44: #{forward.1} parent=1 // pred_region
      _
    $region45: #{forward.1} parent=1 // pred_fallthru
      _
    // Predicated region
    $region46: #{forward.1} parent=1 // pred_check
      _
    $region47: #{forward.1} parent=1 // pred_check_branch
      %93 = sbr.rel (0) target = $region49
    $region48: #{forward.1} parent=1 // pred_region
      _
    $region49: #{forward.1} parent=1 // pred_fallthru
      _
    // Predicated region
    $region50: #{forward.1} parent=1 // pred_check
      _
    $region51: #{forward.1} parent=1 // pred_check_branch
      %95 = sbr.rel (0) target = $region53
    $region52: #{forward.1} parent=1 // pred_region
      _
    $region53: #{forward.1} parent=1 // pred_fallthru
      _
    // Predicated region
    $region54: #{forward.1} parent=1 // pred_check
      _
    $region55: #{forward.1} parent=1 // pred_check_branch
      %97 = sbr.rel (0) target = $region57
    $region56: #{forward.1} parent=1 // pred_region
      %99 = vsyncadd [#allocation14], 0
      %s100 = sshll.u32 %s13, 4
      %s101 = int_to_ptr.hbm [resolvable:$true] %s100
      %s102 = sshll.u32 [#allocation15], 4
      %s103 = int_to_ptr.vmem [resolvable:$true] %s102
      %108 = dma.hbm_to_vmem [thread:$0]  %s101, 2048, %s103, [#allocation14], 128, 128, 8
    $region57: #{forward.1} parent=1 // pred_fallthru
      _
    // Predicated region
    $region58: #{forward.1} parent=1 // pred_check
      _
    $region59: #{forward.1} parent=1 // pred_check_branch
      %110 = sbr.rel (0) target = $region61
    $region60: #{forward.1} parent=1 // pred_region
      _
    $region61: #{forward.1} parent=1 // pred_fallthru
      _
    // Predicated region
    $region62: #{forward.1} parent=1 // pred_check
      _
    $region63: #{forward.1} parent=1 // pred_check_branch
      %112 = sbr.rel (0) target = $region65
    $region64: #{forward.1} parent=1 // pred_region
      %114 = vsyncadd [#allocation17], 0
      %s115 = sshll.u32 %s15, 4
      %s116 = int_to_ptr.hbm [resolvable:$true] %s115
      %s117 = sshll.u32 [#allocation16], 4
      %s118 = int_to_ptr.vmem [resolvable:$true] %s117
      %123 = dma.hbm_to_vmem [thread:$0]  %s116, 2048, %s118, [#allocation17], 128, 128, 8
    $region65: #{forward.1} parent=1 // pred_fallthru
      _
    // Predicated region
    $region66: #{forward.1} parent=1 // pred_check
      _
    $region67: #{forward.1} parent=1 // pred_check_branch
      %125 = sbr.rel (0) target = $region69
    $region68: #{forward.1} parent=1 // pred_region
      _
    $region69: #{forward.1} parent=1 // pred_fallthru
      _
    // Predicated region
    $region70: #{forward.1} parent=1 // pred_check
      _
    $region71: #{forward.1} parent=1 // pred_check_branch
      %127 = sbr.rel (0) target = $region73
    $region72: #{forward.1} parent=1 // pred_region
      %129 = dma.done [#allocation8], 16
    $region73: #{forward.1} parent=1 // pred_fallthru
      _
    // Predicated region
    $region74: #{forward.1} parent=1 // pred_check
      _
    $region75: #{forward.1} parent=1 // pred_check_branch
      %131 = sbr.rel (0) target = $region77
    $region76: #{forward.1} parent=1 // pred_region
      %133 = dma.done [#allocation10], 16
    $region77: #{forward.1} parent=1 // pred_fallthru
      _
    // Predicated region
    $region78: #{forward.1} parent=1 // pred_check
      _
    $region79: #{forward.1} parent=1 // pred_check_branch
      %135 = sbr.rel (0) target = $region81
    $region80: #{forward.1} parent=1 // pred_region
      %137 = dma.done [#allocation10], 16
    $region81: #{forward.1} parent=1 // pred_fallthru
      _
    // Predicated region
    $region82: #{forward.1} parent=1 // pred_check
      _
    $region83: #{forward.1} parent=1 // pred_check_branch
      %139 = sbr.rel (0) target = $region85
    $region84: #{forward.1} parent=1 // pred_region
      %141 = dma.done [#allocation7], 2048
    $region85: #{forward.1} parent=1 // pred_fallthru
      _
    // Predicated region
    $region86: #{forward.1} parent=1 // pred_check
      _
    $region87: #{forward.1} parent=1 // pred_check_branch
      %143 = sbr.rel (0) target = $region89
    $region88: #{forward.1} parent=1 // pred_region
      %145 = dma.done [#allocation14], 2048
    $region89: #{forward.1} parent=1 // pred_fallthru
      _
    // Predicated region
    $region90: #{forward.1} parent=1 // pred_check
      _
    $region91: #{forward.1} parent=1 // pred_check_branch
      %147 = sbr.rel (0) target = $region93
    $region92: #{forward.1} parent=1 // pred_region
      %149 = dma.done [#allocation14], 2048
    $region93: #{forward.1} parent=1 // pred_fallthru
      _
    // Predicated region
    $region94: #{forward.1} parent=1 // pred_check
      _
    $region95: #{forward.1} parent=1 // pred_check_branch
      %151 = sbr.rel (0) target = $region97
    $region96: #{forward.1} parent=1 // pred_region
      %153 = dma.done [#allocation17], 2048
    $region97: #{forward.1} parent=1 // pred_fallthru
      _
    %154 = sfence
    %v155 = vld [vmem:[%s3] sm:$0xff]
    %v156 = vld [vmem:[%s3 + $0x8] sm:$0xff]
    %157 = vst [vmem:[#allocation2] sm:$0xff] %v155
    %158 = vst [vmem:[#allocation2 + $0x8] sm:$0xff] %v156
    %v159 = vld [vmem:[%s4] sm:$0xff]
    %v160 = vld [vmem:[%s4 + $0x8] sm:$0xff]
    %v161 = vld [vmem:[%s4 + $0x10] sm:$0xff]
    %v162 = vld [vmem:[%s4 + $0x18] sm:$0xff]
    %v163 = vld [vmem:[%s4 + $0x20] sm:$0xff]
    %v164 = vld [vmem:[%s4 + $0x28] sm:$0xff]
    %v165 = vld [vmem:[%s4 + $0x30] sm:$0xff]
    %v166 = vld [vmem:[%s4 + $0x38] sm:$0xff]
    %v167 = vld [vmem:[%s5] sm:$0xff]
    %v168 = vld [vmem:[%s6] sm:$0x1]
    %v170 = vperm.slane %v168, 0
    %vm172 = vcmask 64512
    %v174 = vsel %vm172, %v159, 0
    %v177 = vsel %vm172, %v160, 0
    %v180 = vsel %vm172, %v161, 0
    %v183 = vsel %vm172, %v162, 0
    %v186 = vsel %vm172, %v163, 0
    %v189 = vsel %vm172, %v164, 0
    %v192 = vsel %vm172, %v165, 0
    %v195 = vsel %vm172, %v166, 0
    %197 = vmatpush.msra.mxu0 0.0
    %198 = vmatpush.msra.mxu0 0.0
    %199 = vmatpush.msra.mxu0 0.0
    %200 = vmatpush.msra.mxu0 0.0
    %201 = vmatpush.msra.mxu0 0.0
    %202 = vmatpush.msra.mxu0 0.0
    %203 = vmatpush.msra.mxu0 0.0
    %204 = vmatpush.msra.mxu0 0.0
    %205 = vmatpush.msra.mxu0 0.0
    %206 = vmatpush.msra.mxu0 0.0
    %207 = vmatpush.msra.mxu0 0.0
    %208 = vmatpush.msra.mxu0 0.0
    %209 = vmatpush.msra.mxu0 0.0
    %210 = vmatpush.msra.mxu0 0.0
    %211 = vmatpush.msra.mxu0 0.0
    %212 = vmatpush.msra.mxu0 %v167
    %213 = vmatmul.f32.gmra.mxu0 %v174
    %v214 = vpop.f32.mrf.mxu0
    %v215 = vadd.f32 %v170, %v214
    %216 = vmatmul.f32.gmra.mxu0 %v177
    %v217 = vpop.f32.mrf.mxu0
    %v218 = vadd.f32 %v170, %v217
    %219 = vmatmul.f32.gmra.mxu0 %v180
    %v220 = vpop.f32.mrf.mxu0
    %v221 = vadd.f32 %v170, %v220
    %222 = vmatmul.f32.gmra.mxu0 %v183
    %v223 = vpop.f32.mrf.mxu0
    %v224 = vadd.f32 %v170, %v223
    %225 = vmatmul.f32.gmra.mxu0 %v186
    %v226 = vpop.f32.mrf.mxu0
    %v227 = vadd.f32 %v170, %v226
    %228 = vmatmul.f32.gmra.mxu0 %v189
    %v229 = vpop.f32.mrf.mxu0
    %v230 = vadd.f32 %v170, %v229
    %231 = vmatmul.f32.gmra.mxu0 %v192
    %v232 = vpop.f32.mrf.mxu0
    %v233 = vadd.f32 %v170, %v232
    %234 = vmatmul.f32.gmra.mxu0 %v195
    %v235 = vpop.f32.mrf.mxu0
    %v236 = vadd.f32 %v170, %v235
    %237 = vdwg.mxu0
    %238 = vst [vmem:[#allocation4] sm:$0xff] %v215
    %239 = vst [vmem:[#allocation4 + $0x8] sm:$0xff] %v218
    %240 = vst [vmem:[#allocation4 + $0x10] sm:$0xff] %v221
    %241 = vst [vmem:[#allocation4 + $0x18] sm:$0xff] %v224
    %242 = vst [vmem:[#allocation4 + $0x20] sm:$0xff] %v227
    %243 = vst [vmem:[#allocation4 + $0x28] sm:$0xff] %v230
    %244 = vst [vmem:[#allocation4 + $0x30] sm:$0xff] %v233
    %245 = vst [vmem:[#allocation4 + $0x38] sm:$0xff] %v236
    %246 = vst [vmem:[#allocation3] sm:$0xff] 0.0
    %247 = vst [vmem:[#allocation3 + $0x8] sm:$0xff] 0.0
    loop: start=0, step=1, limit=64
    $region98: #{forward.1} parent=1 // loop_pre_header
      _
    $region99: #{forward.1} parent=1 // loop_header
      %s249 = sphi 0, %s253
      %p250 = scmp.ge.s32.totalorder %s249, 64
    $region100: #{forward.1} parent=1 // loop_header_branch
      %252 = sbr.rel (%p250) target = $region104
    $region101: #{forward.1} parent=1 // loop_body
      %s254 = sld [smem:[#allocation6 + %s249]]
      %s255 = sld [smem:[#allocation9 + %s249]]
      %s256 = scalar_lea.vmem [#allocation2], %s254
      %v257 = vld [vmem:[%s256] sm:$0x1]
      %s258 = scalar_lea.vmem [#allocation4], %s249
      %v259 = vld [vmem:[%s258] sm:$0x1]
      %v260 = vadd.f32 %v257, %v259
      %v261 = vmax.f32 %v260, 0.0
      %s262 = scalar_lea.vmem [#allocation3], %s255
      %v263 = vld [vmem:[%s262] sm:$0x1]
      %v264 = vadd.f32 %v263, %v261
      %265 = vst [vmem:[%s262] sm:$0x1] %v264
    $region102: #{forward.1} parent=1 // loop_footer
      %s253 = sadd.s32 1, %s249
    $region103: #{forward.1} parent=1 // loop_footer_branch
      %248 = sbr.rel target = $region99
    $region104: #{forward.1} parent=1 // loop_exit
      _
    %v266 = vld [vmem:[#allocation2] sm:$0xff]
    %v267 = vld [vmem:[#allocation2 + $0x8] sm:$0xff]
    %v268 = vld [vmem:[#allocation3] sm:$0xff]
    %v269 = vld [vmem:[#allocation3 + $0x8] sm:$0xff]
    %v270 = vadd.f32 %v266, %v268
    %v271 = vadd.f32 %v267, %v269
    %v272 = vld [vmem:[#allocation12] sm:$0xff]
    %v273 = vld [vmem:[#allocation12 + $0x8] sm:$0xff]
    %v274 = vld [vmem:[#allocation12 + $0x10] sm:$0xff]
    %v275 = vld [vmem:[#allocation12 + $0x18] sm:$0xff]
    %v276 = vld [vmem:[#allocation12 + $0x20] sm:$0xff]
    %v277 = vld [vmem:[#allocation12 + $0x28] sm:$0xff]
    %v278 = vld [vmem:[#allocation12 + $0x30] sm:$0xff]
    %v279 = vld [vmem:[#allocation12 + $0x38] sm:$0xff]
    %v280 = vld [vmem:[#allocation12 + $0x40] sm:$0xff]
    %v281 = vld [vmem:[#allocation12 + $0x48] sm:$0xff]
    %v282 = vld [vmem:[#allocation12 + $0x50] sm:$0xff]
    %v283 = vld [vmem:[#allocation12 + $0x58] sm:$0xff]
    %v284 = vld [vmem:[#allocation12 + $0x60] sm:$0xff]
    %v285 = vld [vmem:[#allocation12 + $0x68] sm:$0xff]
    %v286 = vld [vmem:[#allocation12 + $0x70] sm:$0xff]
    %v287 = vld [vmem:[#allocation12 + $0x78] sm:$0xff]
    %v288 = vld [vmem:[%s8] sm:$0x1]
    %v290 = vperm.slane %v288, 0
    %292 = vmatpush.msra.mxu0 %v287
    %293 = vmatpush.msra.mxu0 %v286
    %294 = vmatpush.msra.mxu0 %v285
    %295 = vmatpush.msra.mxu0 %v284
    %296 = vmatpush.msra.mxu0 %v283
    %297 = vmatpush.msra.mxu0 %v282
    %298 = vmatpush.msra.mxu0 %v281
    %299 = vmatpush.msra.mxu0 %v280
    %300 = vmatpush.msra.mxu0 %v279
    %301 = vmatpush.msra.mxu0 %v278
    %302 = vmatpush.msra.mxu0 %v277
    %303 = vmatpush.msra.mxu0 %v276
    %304 = vmatpush.msra.mxu0 %v275
    %305 = vmatpush.msra.mxu0 %v274
    %306 = vmatpush.msra.mxu0 %v273
    %307 = vmatpush.msra.mxu0 %v272
    %308 = vmatmul.f32.gmra.mxu0 %v270
    %v309 = vpop.f32.mrf.mxu0
    %v310 = vadd.f32 %v290, %v309
    %311 = vmatmul.f32.gmra.mxu0 %v271
    %v312 = vpop.f32.mrf.mxu0
    %v313 = vadd.f32 %v290, %v312
    %314 = vdwg.mxu0
    %v315 = vmax.f32 %v310, 0.0
    %v316 = vmax.f32 %v313, 0.0
    %v317 = vld [vmem:[#allocation13] sm:$0xff]
    %v318 = vld [vmem:[#allocation13 + $0x8] sm:$0xff]
    %v319 = vld [vmem:[#allocation13 + $0x10] sm:$0xff]
    %v320 = vld [vmem:[#allocation13 + $0x18] sm:$0xff]
    %v321 = vld [vmem:[#allocation13 + $0x20] sm:$0xff]
    %v322 = vld [vmem:[#allocation13 + $0x28] sm:$0xff]
    %v323 = vld [vmem:[#allocation13 + $0x30] sm:$0xff]
    %v324 = vld [vmem:[#allocation13 + $0x38] sm:$0xff]
    %v325 = vld [vmem:[#allocation13 + $0x40] sm:$0xff]
    %v326 = vld [vmem:[#allocation13 + $0x48] sm:$0xff]
    %v327 = vld [vmem:[#allocation13 + $0x50] sm:$0xff]
    %v328 = vld [vmem:[#allocation13 + $0x58] sm:$0xff]
    %v329 = vld [vmem:[#allocation13 + $0x60] sm:$0xff]
    %v330 = vld [vmem:[#allocation13 + $0x68] sm:$0xff]
    %v331 = vld [vmem:[#allocation13 + $0x70] sm:$0xff]
    %v332 = vld [vmem:[#allocation13 + $0x78] sm:$0xff]
    %v333 = vld [vmem:[%s10] sm:$0x1]
    %v335 = vperm.slane %v333, 0
    %337 = vmatpush.msra.mxu0 %v332
    %338 = vmatpush.msra.mxu0 %v331
    %339 = vmatpush.msra.mxu0 %v330
    %340 = vmatpush.msra.mxu0 %v329
    %341 = vmatpush.msra.mxu0 %v328
    %342 = vmatpush.msra.mxu0 %v327
    %343 = vmatpush.msra.mxu0 %v326
    %344 = vmatpush.msra.mxu0 %v325
    %345 = vmatpush.msra.mxu0 %v324
    %346 = vmatpush.msra.mxu0 %v323
    %347 = vmatpush.msra.mxu0 %v322
    %348 = vmatpush.msra.mxu0 %v321
    %349 = vmatpush.msra.mxu0 %v320
    %350 = vmatpush.msra.mxu0 %v319
    %351 = vmatpush.msra.mxu0 %v318
    %352 = vmatpush.msra.mxu0 %v317
    %353 = vmatmul.f32.gmra.mxu0 %v315
    %v354 = vpop.f32.mrf.mxu0
    %v355 = vadd.f32 %v335, %v354
    %356 = vmatmul.f32.gmra.mxu0 %v316
    %v357 = vpop.f32.mrf.mxu0
    %v358 = vadd.f32 %v335, %v357
    %359 = vdwg.mxu0
    %v360 = vmax.f32 %v355, 0.0
    %v361 = vmax.f32 %v358, 0.0
    %362 = vst [vmem:[#allocation2] sm:$0xff] %v360
    %363 = vst [vmem:[#allocation2 + $0x8] sm:$0xff] %v361
    %364 = vst [vmem:[#allocation5] sm:$0xff] 0.0
    loop: start=0, step=1, limit=16
    $region105: #{forward.1} parent=1 // loop_pre_header
      _
    $region106: #{forward.1} parent=1 // loop_header
      %s366 = sphi 0, %s370
      %p367 = scmp.ge.s32.totalorder %s366, 16
    $region107: #{forward.1} parent=1 // loop_header_branch
      %369 = sbr.rel (%p367) target = $region111
    $region108: #{forward.1} parent=1 // loop_body
      %s371 = sld [smem:[#allocation11 + %s366]]
      %s372 = scalar_lea.vmem [#allocation5], %s371
      %v373 = vld [vmem:[%s372] sm:$0x1]
      %s374 = scalar_lea.vmem [#allocation2], %s366
      %v375 = vld [vmem:[%s374] sm:$0x1]
      %v376 = vadd.f32 %v373, %v375
      %377 = vst [vmem:[%s372] sm:$0x1] %v376
    $region109: #{forward.1} parent=1 // loop_footer
      %s370 = sadd.s32 1, %s366
    $region110: #{forward.1} parent=1 // loop_footer_branch
      %365 = sbr.rel target = $region106
    $region111: #{forward.1} parent=1 // loop_exit
      _
    %v378 = vld [vmem:[#allocation5] sm:$0x3]
    %379 = vst [vmem:[%s17] sm:$0x3] %v378
    %v380 = vld [vmem:[%s11] sm:$0xff]
    %v381 = vld [vmem:[%s12] sm:$0x1]
    %v383 = vperm.slane %v381, 0
    %385 = vmatpush.msra.mxu0 0.0
    %386 = vmatpush.msra.mxu0 0.0
    %387 = vmatpush.msra.mxu0 0.0
    %388 = vmatpush.msra.mxu0 0.0
    %389 = vmatpush.msra.mxu0 0.0
    %390 = vmatpush.msra.mxu0 0.0
    %391 = vmatpush.msra.mxu0 0.0
    %392 = vmatpush.msra.mxu0 0.0
    %393 = vmatpush.msra.mxu0 0.0
    %394 = vmatpush.msra.mxu0 0.0
    %395 = vmatpush.msra.mxu0 0.0
    %396 = vmatpush.msra.mxu0 0.0
    %397 = vmatpush.msra.mxu0 0.0
    %398 = vmatpush.msra.mxu0 0.0
    %399 = vmatpush.msra.mxu0 0.0
    %400 = vmatpush.msra.mxu0 %v380
    %401 = vmatmul.f32.gmra.mxu0 %v174
    %v402 = vpop.f32.mrf.mxu0
    %v403 = vadd.f32 %v383, %v402
    %404 = vmatmul.f32.gmra.mxu0 %v177
    %v405 = vpop.f32.mrf.mxu0
    %v406 = vadd.f32 %v383, %v405
    %407 = vmatmul.f32.gmra.mxu0 %v180
    %v408 = vpop.f32.mrf.mxu0
    %v409 = vadd.f32 %v383, %v408
    %410 = vmatmul.f32.gmra.mxu0 %v183
    %v411 = vpop.f32.mrf.mxu0
    %v412 = vadd.f32 %v383, %v411
    %413 = vmatmul.f32.gmra.mxu0 %v186
    %v414 = vpop.f32.mrf.mxu0
    %v415 = vadd.f32 %v383, %v414
    %416 = vmatmul.f32.gmra.mxu0 %v189
    %v417 = vpop.f32.mrf.mxu0
    %v418 = vadd.f32 %v383, %v417
    %419 = vmatmul.f32.gmra.mxu0 %v192
    %v420 = vpop.f32.mrf.mxu0
    %v421 = vadd.f32 %v383, %v420
    %422 = vmatmul.f32.gmra.mxu0 %v195
    %v423 = vpop.f32.mrf.mxu0
    %v424 = vadd.f32 %v383, %v423
    %425 = vdwg.mxu0
    %426 = vst [vmem:[#allocation4] sm:$0xff] %v403
    %427 = vst [vmem:[#allocation4 + $0x8] sm:$0xff] %v406
    %428 = vst [vmem:[#allocation4 + $0x10] sm:$0xff] %v409
    %429 = vst [vmem:[#allocation4 + $0x18] sm:$0xff] %v412
    %430 = vst [vmem:[#allocation4 + $0x20] sm:$0xff] %v415
    %431 = vst [vmem:[#allocation4 + $0x28] sm:$0xff] %v418
    %432 = vst [vmem:[#allocation4 + $0x30] sm:$0xff] %v421
    %433 = vst [vmem:[#allocation4 + $0x38] sm:$0xff] %v424
    %434 = vst [vmem:[#allocation3] sm:$0xff] 0.0
    %435 = vst [vmem:[#allocation3 + $0x8] sm:$0xff] 0.0
    loop: start=0, step=1, limit=64
    $region112: #{forward.1} parent=1 // loop_pre_header
      _
    $region113: #{forward.1} parent=1 // loop_header
      %s437 = sphi 0, %s441
      %p438 = scmp.ge.s32.totalorder %s437, 64
    $region114: #{forward.1} parent=1 // loop_header_branch
      %440 = sbr.rel (%p438) target = $region118
    $region115: #{forward.1} parent=1 // loop_body
      %s442 = sld [smem:[#allocation6 + %s437]]
      %s443 = sld [smem:[#allocation9 + %s437]]
      %s444 = scalar_lea.vmem [#allocation2], %s442
      %v445 = vld [vmem:[%s444] sm:$0x1]
      %s446 = scalar_lea.vmem [#allocation4], %s437
      %v447 = vld [vmem:[%s446] sm:$0x1]
      %v448 = vadd.f32 %v445, %v447
      %v449 = vmax.f32 %v448, 0.0
      %s450 = scalar_lea.vmem [#allocation3], %s443
      %v451 = vld [vmem:[%s450] sm:$0x1]
      %v452 = vadd.f32 %v451, %v449
      %453 = vst [vmem:[%s450] sm:$0x1] %v452
    $region116: #{forward.1} parent=1 // loop_footer
      %s441 = sadd.s32 1, %s437
    $region117: #{forward.1} parent=1 // loop_footer_branch
      %436 = sbr.rel target = $region113
    $region118: #{forward.1} parent=1 // loop_exit
      _
    %v454 = vld [vmem:[#allocation2] sm:$0xff]
    %v455 = vld [vmem:[#allocation2 + $0x8] sm:$0xff]
    %v456 = vld [vmem:[#allocation3] sm:$0xff]
    %v457 = vld [vmem:[#allocation3 + $0x8] sm:$0xff]
    %v458 = vadd.f32 %v454, %v456
    %v459 = vadd.f32 %v455, %v457
    %v460 = vld [vmem:[#allocation15] sm:$0xff]
    %v461 = vld [vmem:[#allocation15 + $0x8] sm:$0xff]
    %v462 = vld [vmem:[#allocation15 + $0x10] sm:$0xff]
    %v463 = vld [vmem:[#allocation15 + $0x18] sm:$0xff]
    %v464 = vld [vmem:[#allocation15 + $0x20] sm:$0xff]
    %v465 = vld [vmem:[#allocation15 + $0x28] sm:$0xff]
    %v466 = vld [vmem:[#allocation15 + $0x30] sm:$0xff]
    %v467 = vld [vmem:[#allocation15 + $0x38] sm:$0xff]
    %v468 = vld [vmem:[#allocation15 + $0x40] sm:$0xff]
    %v469 = vld [vmem:[#allocation15 + $0x48] sm:$0xff]
    %v470 = vld [vmem:[#allocation15 + $0x50] sm:$0xff]
    %v471 = vld [vmem:[#allocation15 + $0x58] sm:$0xff]
    %v472 = vld [vmem:[#allocation15 + $0x60] sm:$0xff]
    %v473 = vld [vmem:[#allocation15 + $0x68] sm:$0xff]
    %v474 = vld [vmem:[#allocation15 + $0x70] sm:$0xff]
    %v475 = vld [vmem:[#allocation15 + $0x78] sm:$0xff]
    %v476 = vld [vmem:[%s14] sm:$0x1]
    %v478 = vperm.slane %v476, 0
    %480 = vmatpush.msra.mxu0 %v475
    %481 = vmatpush.msra.mxu0 %v474
    %482 = vmatpush.msra.mxu0 %v473
    %483 = vmatpush.msra.mxu0 %v472
    %484 = vmatpush.msra.mxu0 %v471
    %485 = vmatpush.msra.mxu0 %v470
    %486 = vmatpush.msra.mxu0 %v469
    %487 = vmatpush.msra.mxu0 %v468
    %488 = vmatpush.msra.mxu0 %v467
    %489 = vmatpush.msra.mxu0 %v466
    %490 = vmatpush.msra.mxu0 %v465
    %491 = vmatpush.msra.mxu0 %v464
    %492 = vmatpush.msra.mxu0 %v463
    %493 = vmatpush.msra.mxu0 %v462
    %494 = vmatpush.msra.mxu0 %v461
    %495 = vmatpush.msra.mxu0 %v460
    %496 = vmatmul.f32.gmra.mxu0 %v458
    %v497 = vpop.f32.mrf.mxu0
    %v498 = vadd.f32 %v478, %v497
    %499 = vmatmul.f32.gmra.mxu0 %v459
    %v500 = vpop.f32.mrf.mxu0
    %v501 = vadd.f32 %v478, %v500
    %502 = vdwg.mxu0
    %v503 = vmax.f32 %v498, 0.0
    %v504 = vmax.f32 %v501, 0.0
    %v505 = vld [vmem:[#allocation16] sm:$0xff]
    %v506 = vld [vmem:[#allocation16 + $0x8] sm:$0xff]
    %v507 = vld [vmem:[#allocation16 + $0x10] sm:$0xff]
    %v508 = vld [vmem:[#allocation16 + $0x18] sm:$0xff]
    %v509 = vld [vmem:[#allocation16 + $0x20] sm:$0xff]
    %v510 = vld [vmem:[#allocation16 + $0x28] sm:$0xff]
    %v511 = vld [vmem:[#allocation16 + $0x30] sm:$0xff]
    %v512 = vld [vmem:[#allocation16 + $0x38] sm:$0xff]
    %v513 = vld [vmem:[#allocation16 + $0x40] sm:$0xff]
    %v514 = vld [vmem:[#allocation16 + $0x48] sm:$0xff]
    %v515 = vld [vmem:[#allocation16 + $0x50] sm:$0xff]
    %v516 = vld [vmem:[#allocation16 + $0x58] sm:$0xff]
    %v517 = vld [vmem:[#allocation16 + $0x60] sm:$0xff]
    %v518 = vld [vmem:[#allocation16 + $0x68] sm:$0xff]
    %v519 = vld [vmem:[#allocation16 + $0x70] sm:$0xff]
    %v520 = vld [vmem:[#allocation16 + $0x78] sm:$0xff]
    %v521 = vld [vmem:[%s16] sm:$0x1]
    %v523 = vperm.slane %v521, 0
    %525 = vmatpush.msra.mxu0 %v520
    %526 = vmatpush.msra.mxu0 %v519
    %527 = vmatpush.msra.mxu0 %v518
    %528 = vmatpush.msra.mxu0 %v517
    %529 = vmatpush.msra.mxu0 %v516
    %530 = vmatpush.msra.mxu0 %v515
    %531 = vmatpush.msra.mxu0 %v514
    %532 = vmatpush.msra.mxu0 %v513
    %533 = vmatpush.msra.mxu0 %v512
    %534 = vmatpush.msra.mxu0 %v511
    %535 = vmatpush.msra.mxu0 %v510
    %536 = vmatpush.msra.mxu0 %v509
    %537 = vmatpush.msra.mxu0 %v508
    %538 = vmatpush.msra.mxu0 %v507
    %539 = vmatpush.msra.mxu0 %v506
    %540 = vmatpush.msra.mxu0 %v505
    %541 = vmatmul.f32.gmra.mxu0 %v503
    %v542 = vpop.f32.mrf.mxu0
    %v543 = vadd.f32 %v523, %v542
    %544 = vmatmul.f32.gmra.mxu0 %v504
    %v545 = vpop.f32.mrf.mxu0
    %v546 = vadd.f32 %v523, %v545
    %547 = vdwg.mxu0
    %v548 = vmax.f32 %v543, 0.0
    %v549 = vmax.f32 %v546, 0.0
    %550 = vst [vmem:[#allocation2] sm:$0xff] %v548
    %551 = vst [vmem:[#allocation2 + $0x8] sm:$0xff] %v549
    %552 = vst [vmem:[#allocation5] sm:$0xff] 0.0
    loop: start=0, step=1, limit=16
    $region119: #{forward.1} parent=1 // loop_pre_header
      _
    $region120: #{forward.1} parent=1 // loop_header
      %s554 = sphi 0, %s558
      %p555 = scmp.ge.s32.totalorder %s554, 16
    $region121: #{forward.1} parent=1 // loop_header_branch
      %557 = sbr.rel (%p555) target = $region125
    $region122: #{forward.1} parent=1 // loop_body
      %s559 = sld [smem:[#allocation11 + %s554]]
      %s560 = scalar_lea.vmem [#allocation5], %s559
      %v561 = vld [vmem:[%s560] sm:$0x1]
      %s562 = scalar_lea.vmem [#allocation2], %s554
      %v563 = vld [vmem:[%s562] sm:$0x1]
      %v564 = vadd.f32 %v561, %v563
      %565 = vst [vmem:[%s560] sm:$0x1] %v564
    $region123: #{forward.1} parent=1 // loop_footer
      %s558 = sadd.s32 1, %s554
    $region124: #{forward.1} parent=1 // loop_footer_branch
      %553 = sbr.rel target = $region120
    $region125: #{forward.1} parent=1 // loop_exit
      _
    %v566 = vld [vmem:[#allocation5] sm:$0x3]
    %567 = vst [vmem:[%s17 + $0x2] sm:$0x3] %v566
    // Predicated region
    $region126: #{forward.1} parent=1 // pred_check
      _
    $region127: #{forward.1} parent=1 // pred_check_branch
      %569 = sbr.rel (0) target = $region129
    $region128: #{forward.1} parent=1 // pred_region
      _
    $region129: #{forward.1} parent=1 // pred_fallthru
      _
    // Predicated region
    $region130: #{forward.1} parent=1 // pred_check
      _
    $region131: #{forward.1} parent=1 // pred_check_branch
      %571 = sbr.rel (0) target = $region133
    $region132: #{forward.1} parent=1 // pred_region
      _
    $region133: #{forward.1} parent=1 // pred_fallthru
      _
    %572 = vsyncpa [#allocation7], 1
    %573 = vsyncpa [#allocation14], 1
    %574 = vsyncpa [#allocation17], 1
    %575 = vsyncpa [#allocation8], 1
    %576 = vsyncpa [#allocation10], 1

</llo_original>
